<compile_context>
chip_gen: v7x
topology: tpu7x:2x2x1
jax: 0.10.0
libtpu: 0.0.40
codegen_flags: <defaults>
</compile_context>

<pallas_src>
import functools
import math

import jax
import jax.numpy as jnp
from jax import lax
from jax.experimental import pallas as pl
from jax.experimental.pallas import tpu as pltpu


def _self_attn_kernel(x_ref, w_ref, b_ref, mask_ref, out_ref, *,
                      nh, dh, block_q, compute_dtype):
    # x_ref:    (1, S, H)   hidden states for this batch element
    # w_ref:    (H, 3H)     fused [Wq*scale | Wk | Wv]  (resident across grid)
    # b_ref:    (1, 3H)     fused [bq*scale | bk | bv]  (f32)
    # mask_ref: (1, 1, S)   additive attention mask for this batch element
    # out_ref:  (1, S, H)   lane-dense context output
    x = x_ref[0]                           # (S, H)
    w = w_ref[...]                         # (H, 3H), already in compute dtype
    b = b_ref[...]                         # (1, 3H), f32
    mask = mask_ref[0]                     # (1, S),  f32 additive

    S, H = x.shape

    # Fused QKV projection: one wide MXU matmul, f32 accumulation.
    qkv = jnp.dot(x.astype(compute_dtype), w,
                  preferred_element_type=jnp.float32) + b        # (S, 3H) f32

    for qs in range(0, S, block_q):
        for h in range(nh):
            q = qkv[qs:qs + block_q, h * dh:(h + 1) * dh]        # (tq, dh)
            k = qkv[:, H + h * dh: H + (h + 1) * dh]             # (S,  dh)
            v = qkv[:, 2 * H + h * dh: 2 * H + (h + 1) * dh]     # (S,  dh)

            # scores = q @ k^T without materializing a transpose of k.
            s = lax.dot_general(
                q.astype(compute_dtype), k.astype(compute_dtype),
                dimension_numbers=(((1,), (1,)), ((), ())),
                preferred_element_type=jnp.float32)              # (tq, S)
            s = s + mask                                         # bcast over rows

            # Numerically stable softmax with deferred normalization (f32).
            m = jnp.max(s, axis=-1, keepdims=True)               # (tq, 1)
            e = jnp.exp(s - m)                                   # (tq, S)
            l = jnp.sum(e, axis=-1, keepdims=True)               # (tq, 1)

            ctx = lax.dot_general(
                e.astype(compute_dtype), v.astype(compute_dtype),
                dimension_numbers=(((1,), (0,)), ((), ())),
                preferred_element_type=jnp.float32)              # (tq, dh)
            # Normalize after the PV matmul: touches (tq, dh), not (tq, S).
            # (pl.reciprocal(..., approx=True) would push this to the EUP.)
            ctx = ctx * pl.reciprocal(l, approx=False)

            out_ref[0, qs:qs + block_q, h * dh:(h + 1) * dh] = (
                ctx.astype(out_ref.dtype))


def _pick_block_q(S):
    if S <= 256:
        return S
    for t in (256, 128, 64):
        if S % t == 0:
            return t
    return S


def bert_self_attention(hidden_states, attention_mask,
                        wq, bq, wk, bk, wv, bv, num_attention_heads,
                        use_bf16=True, block_q=None):
    """hidden_states: (B, S, H) f32; attention_mask: (B, S) additive f32.
    wq/wk/wv are stored as (H, H) in x@W layout (i.e. PyTorch weight.T),
    biases are (H,).  Returns the context layer of shape (B, S, H)."""
    B, S, H = hidden_states.shape
    nh = num_attention_heads
    dh = H // nh
    compute_dtype = jnp.bfloat16 if use_bf16 else jnp.float32

    # Fold 1/sqrt(dh) into the query projection; fuse the three projections.
    scale = 1.0 / math.sqrt(dh)
    w_qkv = jnp.concatenate([wq * scale, wk, wv], axis=1)            # (H, 3H)
    b_qkv = jnp.concatenate([bq * scale, bk, bv]).reshape(1, 3 * H)  # (1, 3H)
    w_qkv = w_qkv.astype(compute_dtype)   # bf16 resident weights on v6e/v7x
    b_qkv = b_qkv.astype(jnp.float32)     # bias added after f32 accumulation

    mask3 = attention_mask.reshape(B, 1, S).astype(jnp.float32)

    if block_q is None:
        block_q = _pick_block_q(S)

    kernel = functools.partial(_self_attn_kernel, nh=nh, dh=dh,
                               block_q=block_q, compute_dtype=compute_dtype)

    out = pl.pallas_call(
        kernel,
        out_shape=jax.ShapeDtypeStruct((B, S, H), hidden_states.dtype),
        grid_spec=pltpu.PrefetchScalarGridSpec(
            num_scalar_prefetch=0,
            grid=(B,),
            in_specs=[
                pl.BlockSpec((1, S, H), lambda b: (b, 0, 0)),    # x
                pl.BlockSpec((H, 3 * H), lambda b: (0, 0)),      # fused W (resident)
                pl.BlockSpec((1, 3 * H), lambda b: (0, 0)),      # fused bias
                pl.BlockSpec((1, 1, S), lambda b: (b, 0, 0)),    # additive mask
            ],
            out_specs=pl.BlockSpec((1, S, H), lambda b: (b, 0, 0)),
        ),
        compiler_params=pltpu.CompilerParams(
            dimension_semantics=("parallel",)),
    )(hidden_states, w_qkv, b_qkv, mask3)
    return out


if __name__ == "__main__":
    # Small shapes consistent with the module (hidden divisible by num heads).
    batch, seq, hidden, num_heads = 2, 8, 32, 4

    key = jax.random.PRNGKey(0)
    k_x, k_m, k_wq, k_bq, k_wk, k_bk, k_wv, k_bv = jax.random.split(key, 8)

    hidden_states = jax.random.normal(k_x, (batch, seq, hidden), jnp.float32)
    # Additive attention mask: 0.0 for kept positions, -10000.0 for masked.
    keep = jax.random.bernoulli(k_m, 0.8, (batch, seq))
    attention_mask = jnp.where(keep, 0.0, -10000.0).astype(jnp.float32)

    init = 1.0 / math.sqrt(hidden)
    wq = jax.random.normal(k_wq, (hidden, hidden), jnp.float32) * init
    wk = jax.random.normal(k_wk, (hidden, hidden), jnp.float32) * init
    wv = jax.random.normal(k_wv, (hidden, hidden), jnp.float32) * init
    bq = jax.random.normal(k_bq, (hidden,), jnp.float32) * 0.01
    bk = jax.random.normal(k_bk, (hidden,), jnp.float32) * 0.01
    bv = jax.random.normal(k_bv, (hidden,), jnp.float32) * 0.01

    out_f32 = bert_self_attention(hidden_states, attention_mask,
                                  wq, bq, wk, bk, wv, bv, num_heads,
                                  use_bf16=False)
    out_bf16 = bert_self_attention(hidden_states, attention_mask,
                                   wq, bq, wk, bk, wv, bv, num_heads,
                                   use_bf16=True)
    jax.block_until_ready((out_f32, out_bf16))
    assert out_f32.shape == (batch, seq, hidden)
    assert out_bf16.shape == (batch, seq, hidden)

    # Pure-JAX reference check (same math, no Pallas).
    def ref(x, mask):
        B, S, H = x.shape
        dh = H // num_heads
        q = (x @ wq + bq).reshape(B, S, num_heads, dh).transpose(0, 2, 1, 3)
        k = (x @ wk + bk).reshape(B, S, num_heads, dh).transpose(0, 2, 1, 3)
        v = (x @ wv + bv).reshape(B, S, num_heads, dh).transpose(0, 2, 1, 3)
        s = jnp.einsum("bhqd,bhkd->bhqk", q, k) / math.sqrt(dh)
        s = s + mask[:, None, None, :]
        p = jax.nn.softmax(s, axis=-1)
        c = jnp.einsum("bhqk,bhkd->bhqd", p, v)
        return c.transpose(0, 2, 1, 3).reshape(B, S, H)

    expected = ref(hidden_states, attention_mask)
    assert jnp.allclose(out_f32, expected, atol=1e-4, rtol=1e-4)
    assert jnp.allclose(out_bf16, expected, atol=5e-2, rtol=5e-2)

    print("KERNEL_OK")
</pallas_src>

<mosaic_0001>
module attributes {stable_mosaic.version = 11 : i64} {
  func.func @_self_attn_kernel(%arg0: i32, %arg1: memref<1x8x32xf32, #tpu.memory_space<vmem>>, %arg2: memref<32x96xf32, #tpu.memory_space<vmem>>, %arg3: memref<1x96xf32, #tpu.memory_space<vmem>>, %arg4: memref<1x1x8xf32, #tpu.memory_space<vmem>>, %arg5: memref<1x8x32xf32, #tpu.memory_space<vmem>>) attributes {dimension_semantics = [#tpu.dimension_semantics<parallel>], iteration_bounds = array<i64: 2>, scalar_prefetch = 0 : i64, scratch_operands = 0 : i64, tpu.core_type = #tpu.core_type<tc>, window_params = [{transform_indices = @transform_0, window_bounds = array<i64: 1, 8, 32>}, {pipeline_mode = #tpu.pipeline_mode<synchronous>, transform_indices = @transform_1, window_bounds = array<i64: 32, 96>}, {pipeline_mode = #tpu.pipeline_mode<synchronous>, transform_indices = @transform_2, window_bounds = array<i64: 1, 96>}, {transform_indices = @transform_3, window_bounds = array<i64: 1, 1, 8>}, {transform_indices = @transform_4, window_bounds = array<i64: 1, 8, 32>}]} {
    %c0 = arith.constant 0 : index
    %c0_0 = arith.constant 0 : index
    %c0_1 = arith.constant 0 : index
    %0 = vector.load %arg1[%c0, %c0_0, %c0_1] : memref<1x8x32xf32, #tpu.memory_space<vmem>>, vector<1x8x32xf32>
    %1 = vector.shape_cast %0 : vector<1x8x32xf32> to vector<8x32xf32>
    %c0_2 = arith.constant 0 : index
    %c0_3 = arith.constant 0 : index
    %2 = vector.load %arg2[%c0_2, %c0_3] : memref<32x96xf32, #tpu.memory_space<vmem>>, vector<32x96xf32>
    %c0_4 = arith.constant 0 : index
    %c0_5 = arith.constant 0 : index
    %3 = vector.load %arg3[%c0_4, %c0_5] : memref<1x96xf32, #tpu.memory_space<vmem>>, vector<1x96xf32>
    %c0_6 = arith.constant 0 : index
    %c0_7 = arith.constant 0 : index
    %c0_8 = arith.constant 0 : index
    %4 = vector.load %arg4[%c0_6, %c0_7, %c0_8] : memref<1x1x8xf32, #tpu.memory_space<vmem>>, vector<1x1x8xf32>
    %5 = vector.shape_cast %4 : vector<1x1x8xf32> to vector<1x8xf32>
    %cst = arith.constant dense<0.000000e+00> : vector<8x96xf32>
    %6 = tpu.matmul %1, %2, %cst {dimension_numbers = #tpu.dot_dimension_numbers<[1], [0], [0], [1], [0, 0, 1, 1], [], []>} : vector<8x32xf32>, vector<32x96xf32>, vector<8x96xf32> -> vector<8x96xf32>
    %7 = vector.broadcast %3 : vector<1x96xf32> to vector<8x96xf32>
    %8 = arith.addf %6, %7 : vector<8x96xf32>
    %9 = vector.extract_strided_slice %8 {offsets = [0, 0], sizes = [8, 8], strides = [1, 1]} : vector<8x96xf32> to vector<8x8xf32>
    %10 = vector.extract_strided_slice %8 {offsets = [0, 32], sizes = [8, 8], strides = [1, 1]} : vector<8x96xf32> to vector<8x8xf32>
    %11 = vector.extract_strided_slice %8 {offsets = [0, 64], sizes = [8, 8], strides = [1, 1]} : vector<8x96xf32> to vector<8x8xf32>
    %cst_9 = arith.constant dense<0.000000e+00> : vector<8x8xf32>
    %12 = tpu.matmul %9, %10, %cst_9 {dimension_numbers = #tpu.dot_dimension_numbers<[1], [1], [0], [0], [0, 0, 1, 0], [], []>} : vector<8x8xf32>, vector<8x8xf32>, vector<8x8xf32> -> vector<8x8xf32>
    %13 = vector.broadcast %5 : vector<1x8xf32> to vector<8x8xf32>
    %14 = arith.addf %12, %13 : vector<8x8xf32>
    %cst_10 = arith.constant dense<0xFF800000> : vector<8xf32>
    %15 = vector.multi_reduction <maximumf>, %14, %cst_10 [1] : vector<8x8xf32> to vector<8xf32>
    %16 = vector.shape_cast %15 : vector<8xf32> to vector<8x1xf32>
    %17 = vector.broadcast %16 : vector<8x1xf32> to vector<8x8xf32>
    %18 = arith.subf %14, %17 : vector<8x8xf32>
    %19 = math.exp %18 : vector<8x8xf32>
    %cst_11 = arith.constant dense<0.000000e+00> : vector<8xf32>
    %20 = vector.multi_reduction <add>, %19, %cst_11 [1] : vector<8x8xf32> to vector<8xf32>
    %21 = vector.shape_cast %20 : vector<8xf32> to vector<8x1xf32>
    %cst_12 = arith.constant dense<0.000000e+00> : vector<8x8xf32>
    %22 = tpu.matmul %19, %11, %cst_12 {dimension_numbers = #tpu.dot_dimension_numbers<[1], [0], [0], [1], [0, 0, 1, 1], [], []>} : vector<8x8xf32>, vector<8x8xf32>, vector<8x8xf32> -> vector<8x8xf32>
    %23 = tpu.reciprocal %21 : vector<8x1xf32> -> vector<8x1xf32>
    %24 = vector.broadcast %23 : vector<8x1xf32> to vector<8x8xf32>
    %25 = arith.mulf %22, %24 : vector<8x8xf32>
    %c0_13 = arith.constant 0 : index
    %c0_14 = arith.constant 0 : index
    %c0_15 = arith.constant 0 : index
    %26 = vector.load %arg5[%c0_13, %c0_14, %c0_15] : memref<1x8x32xf32, #tpu.memory_space<vmem>>, vector<1x8x8xf32>
    %27 = vector.shape_cast %26 : vector<1x8x8xf32> to vector<8x8xf32>
    %28 = vector.shape_cast %25 : vector<8x8xf32> to vector<1x8x8xf32>
    tpu.vector_store %arg5[%c0_13, %c0_14, %c0_15], %28 {strides = array<i32>} : memref<1x8x32xf32, #tpu.memory_space<vmem>>, vector<1x8x8xf32>,
    %29 = vector.extract_strided_slice %8 {offsets = [0, 8], sizes = [8, 8], strides = [1, 1]} : vector<8x96xf32> to vector<8x8xf32>
    %30 = vector.extract_strided_slice %8 {offsets = [0, 40], sizes = [8, 8], strides = [1, 1]} : vector<8x96xf32> to vector<8x8xf32>
    %31 = vector.extract_strided_slice %8 {offsets = [0, 72], sizes = [8, 8], strides = [1, 1]} : vector<8x96xf32> to vector<8x8xf32>
    %cst_16 = arith.constant dense<0.000000e+00> : vector<8x8xf32>
    %32 = tpu.matmul %29, %30, %cst_16 {dimension_numbers = #tpu.dot_dimension_numbers<[1], [1], [0], [0], [0, 0, 1, 0], [], []>} : vector<8x8xf32>, vector<8x8xf32>, vector<8x8xf32> -> vector<8x8xf32>
    %33 = vector.broadcast %5 : vector<1x8xf32> to vector<8x8xf32>
    %34 = arith.addf %32, %33 : vector<8x8xf32>
    %cst_17 = arith.constant dense<0xFF800000> : vector<8xf32>
    %35 = vector.multi_reduction <maximumf>, %34, %cst_17 [1] : vector<8x8xf32> to vector<8xf32>
    %36 = vector.shape_cast %35 : vector<8xf32> to vector<8x1xf32>
    %37 = vector.broadcast %36 : vector<8x1xf32> to vector<8x8xf32>
    %38 = arith.subf %34, %37 : vector<8x8xf32>
    %39 = math.exp %38 : vector<8x8xf32>
    %cst_18 = arith.constant dense<0.000000e+00> : vector<8xf32>
    %40 = vector.multi_reduction <add>, %39, %cst_18 [1] : vector<8x8xf32> to vector<8xf32>
    %41 = vector.shape_cast %40 : vector<8xf32> to vector<8x1xf32>
    %cst_19 = arith.constant dense<0.000000e+00> : vector<8x8xf32>
    %42 = tpu.matmul %39, %31, %cst_19 {dimension_numbers = #tpu.dot_dimension_numbers<[1], [0], [0], [1], [0, 0, 1, 1], [], []>} : vector<8x8xf32>, vector<8x8xf32>, vector<8x8xf32> -> vector<8x8xf32>
    %43 = tpu.reciprocal %41 : vector<8x1xf32> -> vector<8x1xf32>
    %44 = vector.broadcast %43 : vector<8x1xf32> to vector<8x8xf32>
    %45 = arith.mulf %42, %44 : vector<8x8xf32>
    %c0_20 = arith.constant 0 : index
    %c0_21 = arith.constant 0 : index
    %c8 = arith.constant 8 : index
    %46 = vector.load %arg5[%c0_20, %c0_21, %c8] : memref<1x8x32xf32, #tpu.memory_space<vmem>>, vector<1x8x8xf32>
    %47 = vector.shape_cast %46 : vector<1x8x8xf32> to vector<8x8xf32>
    %48 = vector.shape_cast %45 : vector<8x8xf32> to vector<1x8x8xf32>
    tpu.vector_store %arg5[%c0_20, %c0_21, %c8], %48 {strides = array<i32>} : memref<1x8x32xf32, #tpu.memory_space<vmem>>, vector<1x8x8xf32>,
    %49 = vector.extract_strided_slice %8 {offsets = [0, 16], sizes = [8, 8], strides = [1, 1]} : vector<8x96xf32> to vector<8x8xf32>
    %50 = vector.extract_strided_slice %8 {offsets = [0, 48], sizes = [8, 8], strides = [1, 1]} : vector<8x96xf32> to vector<8x8xf32>
    %51 = vector.extract_strided_slice %8 {offsets = [0, 80], sizes = [8, 8], strides = [1, 1]} : vector<8x96xf32> to vector<8x8xf32>
    %cst_22 = arith.constant dense<0.000000e+00> : vector<8x8xf32>
    %52 = tpu.matmul %49, %50, %cst_22 {dimension_numbers = #tpu.dot_dimension_numbers<[1], [1], [0], [0], [0, 0, 1, 0], [], []>} : vector<8x8xf32>, vector<8x8xf32>, vector<8x8xf32> -> vector<8x8xf32>
    %53 = vector.broadcast %5 : vector<1x8xf32> to vector<8x8xf32>
    %54 = arith.addf %52, %53 : vector<8x8xf32>
    %cst_23 = arith.constant dense<0xFF800000> : vector<8xf32>
    %55 = vector.multi_reduction <maximumf>, %54, %cst_23 [1] : vector<8x8xf32> to vector<8xf32>
    %56 = vector.shape_cast %55 : vector<8xf32> to vector<8x1xf32>
    %57 = vector.broadcast %56 : vector<8x1xf32> to vector<8x8xf32>
    %58 = arith.subf %54, %57 : vector<8x8xf32>
    %59 = math.exp %58 : vector<8x8xf32>
    %cst_24 = arith.constant dense<0.000000e+00> : vector<8xf32>
    %60 = vector.multi_reduction <add>, %59, %cst_24 [1] : vector<8x8xf32> to vector<8xf32>
    %61 = vector.shape_cast %60 : vector<8xf32> to vector<8x1xf32>
    %cst_25 = arith.constant dense<0.000000e+00> : vector<8x8xf32>
    %62 = tpu.matmul %59, %51, %cst_25 {dimension_numbers = #tpu.dot_dimension_numbers<[1], [0], [0], [1], [0, 0, 1, 1], [], []>} : vector<8x8xf32>, vector<8x8xf32>, vector<8x8xf32> -> vector<8x8xf32>
    %63 = tpu.reciprocal %61 : vector<8x1xf32> -> vector<8x1xf32>
    %64 = vector.broadcast %63 : vector<8x1xf32> to vector<8x8xf32>
    %65 = arith.mulf %62, %64 : vector<8x8xf32>
    %c0_26 = arith.constant 0 : index
    %c0_27 = arith.constant 0 : index
    %c16 = arith.constant 16 : index
    %66 = vector.load %arg5[%c0_26, %c0_27, %c16] : memref<1x8x32xf32, #tpu.memory_space<vmem>>, vector<1x8x8xf32>
    %67 = vector.shape_cast %66 : vector<1x8x8xf32> to vector<8x8xf32>
    %68 = vector.shape_cast %65 : vector<8x8xf32> to vector<1x8x8xf32>
    tpu.vector_store %arg5[%c0_26, %c0_27, %c16], %68 {strides = array<i32>} : memref<1x8x32xf32, #tpu.memory_space<vmem>>, vector<1x8x8xf32>,
    %69 = vector.extract_strided_slice %8 {offsets = [0, 24], sizes = [8, 8], strides = [1, 1]} : vector<8x96xf32> to vector<8x8xf32>
    %70 = vector.extract_strided_slice %8 {offsets = [0, 56], sizes = [8, 8], strides = [1, 1]} : vector<8x96xf32> to vector<8x8xf32>
    %71 = vector.extract_strided_slice %8 {offsets = [0, 88], sizes = [8, 8], strides = [1, 1]} : vector<8x96xf32> to vector<8x8xf32>
    %cst_28 = arith.constant dense<0.000000e+00> : vector<8x8xf32>
    %72 = tpu.matmul %69, %70, %cst_28 {dimension_numbers = #tpu.dot_dimension_numbers<[1], [1], [0], [0], [0, 0, 1, 0], [], []>} : vector<8x8xf32>, vector<8x8xf32>, vector<8x8xf32> -> vector<8x8xf32>
    %73 = vector.broadcast %5 : vector<1x8xf32> to vector<8x8xf32>
    %74 = arith.addf %72, %73 : vector<8x8xf32>
    %cst_29 = arith.constant dense<0xFF800000> : vector<8xf32>
    %75 = vector.multi_reduction <maximumf>, %74, %cst_29 [1] : vector<8x8xf32> to vector<8xf32>
    %76 = vector.shape_cast %75 : vector<8xf32> to vector<8x1xf32>
    %77 = vector.broadcast %76 : vector<8x1xf32> to vector<8x8xf32>
    %78 = arith.subf %74, %77 : vector<8x8xf32>
    %79 = math.exp %78 : vector<8x8xf32>
    %cst_30 = arith.constant dense<0.000000e+00> : vector<8xf32>
    %80 = vector.multi_reduction <add>, %79, %cst_30 [1] : vector<8x8xf32> to vector<8xf32>
    %81 = vector.shape_cast %80 : vector<8xf32> to vector<8x1xf32>
    %cst_31 = arith.constant dense<0.000000e+00> : vector<8x8xf32>
    %82 = tpu.matmul %79, %71, %cst_31 {dimension_numbers = #tpu.dot_dimension_numbers<[1], [0], [0], [1], [0, 0, 1, 1], [], []>} : vector<8x8xf32>, vector<8x8xf32>, vector<8x8xf32> -> vector<8x8xf32>
    %83 = tpu.reciprocal %81 : vector<8x1xf32> -> vector<8x1xf32>
    %84 = vector.broadcast %83 : vector<8x1xf32> to vector<8x8xf32>
    %85 = arith.mulf %82, %84 : vector<8x8xf32>
    %c0_32 = arith.constant 0 : index
    %c0_33 = arith.constant 0 : index
    %c24 = arith.constant 24 : index
    %86 = vector.load %arg5[%c0_32, %c0_33, %c24] : memref<1x8x32xf32, #tpu.memory_space<vmem>>, vector<1x8x8xf32>
    %87 = vector.shape_cast %86 : vector<1x8x8xf32> to vector<8x8xf32>
    %88 = vector.shape_cast %85 : vector<8x8xf32> to vector<1x8x8xf32>
    tpu.vector_store %arg5[%c0_32, %c0_33, %c24], %88 {strides = array<i32>} : memref<1x8x32xf32, #tpu.memory_space<vmem>>, vector<1x8x8xf32>,
    return
  }
  func.func @transform_0(%arg0: i32) -> (i32, i32, i32) {
    %c0_i32 = arith.constant 0 : i32
    %c0_i32_0 = arith.constant 0 : i32
    %c0_i32_1 = arith.constant 0 : i32
    return %arg0, %c0_i32, %c0_i32_0 : i32, i32, i32
  }
  func.func @transform_1(%arg0: i32) -> (i32, i32) {
    %c0_i32 = arith.constant 0 : i32
    %c0_i32_0 = arith.constant 0 : i32
    %c0_i32_1 = arith.constant 0 : i32
    return %c0_i32, %c0_i32_0 : i32, i32
  }
  func.func @transform_2(%arg0: i32) -> (i32, i32) {
    %c0_i32 = arith.constant 0 : i32
    %c0_i32_0 = arith.constant 0 : i32
    %c0_i32_1 = arith.constant 0 : i32
    return %c0_i32, %c0_i32_0 : i32, i32
  }
  func.func @transform_3(%arg0: i32) -> (i32, i32, i32) {
    %c0_i32 = arith.constant 0 : i32
    %c0_i32_0 = arith.constant 0 : i32
    %c0_i32_1 = arith.constant 0 : i32
    return %arg0, %c0_i32, %c0_i32_0 : i32, i32, i32
  }
  func.func @transform_4(%arg0: i32) -> (i32, i32, i32) {
    %c0_i32 = arith.constant 0 : i32
    %c0_i32_0 = arith.constant 0 : i32
    %c0_i32_1 = arith.constant 0 : i32
    return %arg0, %c0_i32, %c0_i32_0 : i32, i32, i32
  }
}

</mosaic_0001>

<llo_original>
// kernel: tpu_custom_call.1
$region0: #{tpu_custom_call.1}
  #allocation0 [shape = 'u32[]', space=smem, size = 0x4, offset = 0x4, fixed_abs, tag = 'smem constant byte address 0x4 - core index']
  #allocation1 [shape = 'u32[144,128]{1,0:T(1,128)}', space=vmem, size = 0x12000, scoped, tag = 'internal scratch']
  %s0 = inlined_call_operand.hbm [shape: f32[2,8,32], index: 0, kind: input, shape index: {}]
  %s1 = inlined_call_operand.hbm [shape: f32[32,96], index: 1, kind: input, shape index: {}]
  %s2 = inlined_call_operand.vmem [shape: f32[1,96], index: 2, kind: input, shape index: {}]
  %s3 = inlined_call_operand.vmem [shape: f32[2,1,8], index: 3, kind: input, shape index: {}]
  %s4 = inlined_call_operand.hbm [shape: f32[2,8,32], index: 4, kind: output, shape index: {}]
  %s5 = sld [smem:[#allocation0]]
  $region57: #{tpu_custom_call.1} parent=0
    _
  %s7 = ssub.s32 1, %s5
  %s8 = scalar_select 0, %s7, %s5
  $region1: #{tpu_custom_call.1} parent=0
    #allocation2 [shape = 'u8[8192]{0}', space=vmem, size = 0x2000, scoped, tag = 'input window, operand 0']
    #allocation3 [shape = 's32[2]{0}', space=sflag, size = 0x8, scoped, tag = 'scoped memory for tpu_custom_call.1']
    #allocation4 [shape = 's32[2]{0}', space=sflag, size = 0x8, scoped, tag = 'scoped memory for tpu_custom_call.1']
    #allocation5 [shape = 'u8[16384]{0}', space=vmem, size = 0x4000, scoped, tag = 'input window, operand 1, single buffered']
    #allocation6 [shape = 's32[1]{0}', space=sflag, size = 0x4, scoped, tag = 'scoped memory for tpu_custom_call.1']
    #allocation7 [shape = 'u8[8192]{0}', space=vmem, size = 0x2000, scoped, tag = 'output window, operand 0']
    %9 = vsyncpa [#allocation3], 0
    %s10 = scalar_lea.sflag [#allocation3], 1
    %11 = vsyncpa %s10, 0
    %12 = vsyncpa [#allocation6], 0
    %13 = vsyncpa [#allocation4], 0
    %s14 = scalar_lea.sflag [#allocation4], 1
    %15 = vsyncpa %s14, 0
    loop: start=0, step=1, limit=4
    $region2: #{tpu_custom_call.1} parent=1 // loop_pre_header
      _
    $region3: #{tpu_custom_call.1} parent=1 // loop_header
      %s17 = sphi 0, %s21
      %p18 = scmp.ge.s32.totalorder %s17, 4
      %s27 = sphi 0, %s29
      %s30 = sphi 0, %s27
      %s31 = sphi 0, %s30
      %s47 = sphi 0, %s31
      %s51 = sphi 0, %s51
      %s53 = sphi 0, %s51
      %s54 = sphi 0, %s53
      %s68 = sphi 0, %s54
      %s72 = sphi 0, %s72
      %s74 = sphi 0, %s72
      %s75 = sphi 0, %s74
      %s89 = sphi 0, %s75
      %s95 = sphi 0, %s97
      %s98 = sphi 0, %s95
      %s99 = sphi 0, %s98
      %s115 = sphi 0, %s99
      %s121 = sphi 0, %s123
      %s124 = sphi 0, %s121
      %s125 = sphi 0, %s124
      %s141 = sphi 0, %s125
    $region4: #{tpu_custom_call.1} parent=1 // loop_header_branch
      %20 = sbr.rel (%p18) target = $region8
    $region5: #{tpu_custom_call.1} parent=1 // loop_body
      %s22 = ssub.s32 %s17, 1
      %s23 = ssub.s32 %s17, 2
      %s24 = sadd.s32 %s17, 1
      %s25 = ssub.s32 %s17, %s24
      %p26 = scmp.eq.s32.totalorder %s25, 0
      %s28 = sadd.s32 %s27, 1
      %s29 = scalar_select %p26, %s27, %s28
      %p32 = pneg %p26
      %p33 = scmp.eq.s32.totalorder %s17, 1
      %p34 = por %p32, %p33
      %p35 = scmp.ne.s32.totalorder %s27, %s30
      %p36 = scmp.eq.s32.totalorder %s17, 0
      %p37 = por %p35, %p36
      %p38 = scmp.ne.s32.totalorder %s27, %s30
      %p39 = scmp.eq.s32.totalorder %s22, 1
      %p40 = por %p38, %p39
      %p41 = scmp.ne.s32.totalorder %s30, %s31
      %p42 = scmp.eq.s32.totalorder %s22, 0
      %p43 = por %p41, %p42
      %p44 = scmp.ne.s32.totalorder %s30, %s31
      %p45 = scmp.eq.s32.totalorder %s23, 1
      %p46 = por %p44, %p45
      %p48 = scmp.ne.s32.totalorder %s31, %s47
      %p49 = scmp.eq.s32.totalorder %s23, 0
      %p50 = por %p48, %p49
      %s52 = sadd.s32 %s51, 1
      %p55 = scmp.eq.s32.totalorder %s17, 1
      %p56 = scmp.ne.s32.totalorder %s51, %s53
      %p57 = scmp.eq.s32.totalorder %s17, 0
      %p58 = por %p56, %p57
      %p59 = scmp.ne.s32.totalorder %s51, %s53
      %p60 = scmp.eq.s32.totalorder %s22, 1
      %p61 = por %p59, %p60
      %p62 = scmp.ne.s32.totalorder %s53, %s54
      %p63 = scmp.eq.s32.totalorder %s22, 0
      %p64 = por %p62, %p63
      %p65 = scmp.ne.s32.totalorder %s53, %s54
      %p66 = scmp.eq.s32.totalorder %s23, 1
      %p67 = por %p65, %p66
      %p69 = scmp.ne.s32.totalorder %s54, %s68
      %p70 = scmp.eq.s32.totalorder %s23, 0
      %p71 = por %p69, %p70
      %s73 = sadd.s32 %s72, 1
      %p76 = scmp.eq.s32.totalorder %s17, 1
      %p77 = scmp.ne.s32.totalorder %s72, %s74
      %p78 = scmp.eq.s32.totalorder %s17, 0
      %p79 = por %p77, %p78
      %p80 = scmp.ne.s32.totalorder %s72, %s74
      %p81 = scmp.eq.s32.totalorder %s22, 1
      %p82 = por %p80, %p81
      %p83 = scmp.ne.s32.totalorder %s74, %s75
      %p84 = scmp.eq.s32.totalorder %s22, 0
      %p85 = por %p83, %p84
      %p86 = scmp.ne.s32.totalorder %s74, %s75
      %p87 = scmp.eq.s32.totalorder %s23, 1
      %p88 = por %p86, %p87
      %p90 = scmp.ne.s32.totalorder %s75, %s89
      %p91 = scmp.eq.s32.totalorder %s23, 0
      %p92 = por %p90, %p91
      %s93 = ssub.s32 %s17, %s24
      %p94 = scmp.eq.s32.totalorder %s93, 0
      %s96 = sadd.s32 %s95, 1
      %s97 = scalar_select %p94, %s95, %s96
      %p100 = pneg %p94
      %p101 = scmp.eq.s32.totalorder %s17, 1
      %p102 = por %p100, %p101
      %p103 = scmp.ne.s32.totalorder %s95, %s98
      %p104 = scmp.eq.s32.totalorder %s17, 0
      %p105 = por %p103, %p104
      %p106 = scmp.ne.s32.totalorder %s95, %s98
      %p107 = scmp.eq.s32.totalorder %s22, 1
      %p108 = por %p106, %p107
      %p109 = scmp.ne.s32.totalorder %s98, %s99
      %p110 = scmp.eq.s32.totalorder %s22, 0
      %p111 = por %p109, %p110
      %p112 = scmp.ne.s32.totalorder %s98, %s99
      %p113 = scmp.eq.s32.totalorder %s23, 1
      %p114 = por %p112, %p113
      %p116 = scmp.ne.s32.totalorder %s99, %s115
      %p117 = scmp.eq.s32.totalorder %s23, 0
      %p118 = por %p116, %p117
      %s119 = ssub.s32 %s17, %s24
      %p120 = scmp.eq.s32.totalorder %s119, 0
      %s122 = sadd.s32 %s121, 1
      %s123 = scalar_select %p120, %s121, %s122
      %p126 = pneg %p120
      %p127 = scmp.eq.s32.totalorder %s17, 1
      %p128 = por %p126, %p127
      %p129 = scmp.ne.s32.totalorder %s121, %s124
      %p130 = scmp.eq.s32.totalorder %s17, 0
      %p131 = por %p129, %p130
      %p132 = scmp.ne.s32.totalorder %s121, %s124
      %p133 = scmp.eq.s32.totalorder %s22, 1
      %p134 = por %p132, %p133
      %p135 = scmp.ne.s32.totalorder %s124, %s125
      %p136 = scmp.eq.s32.totalorder %s22, 0
      %p137 = por %p135, %p136
      %p138 = scmp.ne.s32.totalorder %s124, %s125
      %p139 = scmp.eq.s32.totalorder %s23, 1
      %p140 = por %p138, %p139
      %p142 = scmp.ne.s32.totalorder %s125, %s141
      %p143 = scmp.eq.s32.totalorder %s23, 0
      %p144 = por %p142, %p143
      %p145 = scmp.le.s32.totalorder 1, %s17
      %p146 = scmp.lt.s32.totalorder %s17, 3
      %p147 = pnand %p145, %p146
      %p148 = pneg %p147
      // Predicated region
      $region9: #{tpu_custom_call.1} parent=5 // pred_check
        _
      $region10: #{tpu_custom_call.1} parent=5 // pred_check_branch
        %150 = sbr.rel (%p147) target = $region12
      $region11: #{tpu_custom_call.1} parent=5 // pred_region
        %s151 = ssub.s32 %s17, 1
        // Predicated region
        $region13: #{tpu_custom_call.1} parent=11 // pred_check
          %p152 = pneg %p64
        $region14: #{tpu_custom_call.1} parent=11 // pred_check_branch
          %154 = sbr.rel (%p152) target = $region16
        $region15: #{tpu_custom_call.1} parent=11 // pred_region
          %s156 = ssub.s32 512, 512
          %157 = vsyncadd [#allocation6], %s156
          %s158 = sshll.u32 [#allocation5], 4
          %s159 = int_to_ptr.vmem [resolvable:$true] %s158
          %164 = dma.hbm_to_vmem [thread:$0]  %s1, 512, %s159, [#allocation6], 128, 128, 8
        $region16: #{tpu_custom_call.1} parent=11 // pred_fallthru
          _
        // Predicated region
        $region17: #{tpu_custom_call.1} parent=11 // pred_check
          %p165 = pneg %p85
        $region18: #{tpu_custom_call.1} parent=11 // pred_check_branch
          %167 = sbr.rel (%p165) target = $region20
        $region19: #{tpu_custom_call.1} parent=11 // pred_region
          _
        $region20: #{tpu_custom_call.1} parent=11 // pred_fallthru
          _
      $region12: #{tpu_custom_call.1} parent=5 // pred_fallthru
        _
      %p168 = scmp.lt.s32.totalorder %s17, 2
      // Predicated region
      $region21: #{tpu_custom_call.1} parent=5 // pred_check
        %p169 = pneg %p168
      $region22: #{tpu_custom_call.1} parent=5 // pred_check_branch
        %171 = sbr.rel (%p169) target = $region24
      $region23: #{tpu_custom_call.1} parent=5 // pred_region
        // Predicated region
        $region25: #{tpu_custom_call.1} parent=23 // pred_check
          %p172 = pneg %p37
        $region26: #{tpu_custom_call.1} parent=23 // pred_check_branch
          %174 = sbr.rel (%p172) target = $region28
        $region27: #{tpu_custom_call.1} parent=23 // pred_region
          %s175 = sand.u32 %s27, 1
          %s176 = scalar_lea.sflag [#allocation3], %s175
          %s177 = sand.u32 %s27, 1
          %s178 = smul.addr %s177, 8
          %s179 = scalar_lea.vmem [#allocation2], %s178
          %s181 = ssub.s32 128, 128
          %182 = vsyncadd %s176, %s181
          %s183 = smul.addr %s17, 128
          %s184 = scalar_lea.hbm %s0, %s183
          %s186 = sshll.u32 %s179, 4
          %s187 = int_to_ptr.vmem [resolvable:$true] %s186
          %189 = dma.hbm_to_vmem [thread:$0]  %s184, 128, %s187, %s176
        $region28: #{tpu_custom_call.1} parent=23 // pred_fallthru
          _
        // Predicated region
        $region29: #{tpu_custom_call.1} parent=23 // pred_check
          %p190 = pneg %p105
        $region30: #{tpu_custom_call.1} parent=23 // pred_check_branch
          %192 = sbr.rel (%p190) target = $region32
        $region31: #{tpu_custom_call.1} parent=23 // pred_region
          %p193 = scmp.lt.s32.totalorder %s17, 1
          %s194 = scalar_select %p193, %s17, 1
          %s195 = scalar_lea.vmem %s3, %s194
        $region32: #{tpu_custom_call.1} parent=23 // pred_fallthru
          _
      $region24: #{tpu_custom_call.1} parent=5 // pred_fallthru
        _
      %p196 = scmp.le.s32.totalorder 1, %s17
      %p197 = scmp.lt.s32.totalorder %s17, 3
      %p198 = pnand %p196, %p197
      %p199 = pneg %p198
      // Predicated region
      $region33: #{tpu_custom_call.1} parent=5 // pred_check
        _
      $region34: #{tpu_custom_call.1} parent=5 // pred_check_branch
        %201 = sbr.rel (%p198) target = $region36
      $region35: #{tpu_custom_call.1} parent=5 // pred_region
        %s202 = ssub.s32 %s17, 1
        %s203 = sand.u32 %s30, 1
        %s204 = scalar_lea.sflag [#allocation3], %s203
        %s205 = sand.u32 %s30, 1
        %s206 = smul.addr %s205, 8
        %s207 = scalar_lea.vmem [#allocation2], %s206
        // Predicated region
        $region37: #{tpu_custom_call.1} parent=35 // pred_check
          %p208 = pneg %p43
        $region38: #{tpu_custom_call.1} parent=35 // pred_check_branch
          %210 = sbr.rel (%p208) target = $region40
        $region39: #{tpu_custom_call.1} parent=35 // pred_region
          %211 = dma.done %s204, 128
        $region40: #{tpu_custom_call.1} parent=35 // pred_fallthru
          _
        // Predicated region
        $region41: #{tpu_custom_call.1} parent=35 // pred_check
          %p212 = pneg %p64
        $region42: #{tpu_custom_call.1} parent=35 // pred_check_branch
          %214 = sbr.rel (%p212) target = $region44
        $region43: #{tpu_custom_call.1} parent=35 // pred_region
          %215 = dma.done [#allocation6], 512
        $region44: #{tpu_custom_call.1} parent=35 // pred_fallthru
          _
        %s216 = sand.u32 %s30, 1
        %s217 = scalar_lea.sflag [#allocation3], %s216
        %s218 = sand.u32 %s30, 1
        %s219 = smul.addr %s218, 8
        %s220 = scalar_lea.vmem [#allocation2], %s219
        %p221 = pneg %p43
        %p222 = pneg %p40
        %p223 = pneg %p64
        %p224 = pneg %p61
        %p225 = pneg %p85
        %p226 = pneg %p82
        %p227 = scmp.lt.s32.totalorder %s22, 1
        %s228 = scalar_select %p227, %s22, 1
        %s229 = scalar_lea.vmem %s3, %s228
        %p230 = pneg %p111
        %p231 = pneg %p108
        %p232 = pneg %p137
        %p233 = pneg %p134
        %s234 = sand.u32 %s124, 1
        %s235 = scalar_lea.sflag [#allocation4], %s234
        %s236 = sand.u32 %s124, 1
        %s237 = smul.addr %s236, 8
        %s238 = scalar_lea.vmem [#allocation7], %s237
        %p239 = scmp.lt.s32.totalorder %s22, 1
        %s240 = scalar_select %p239, %s22, 1
        %s241 = scalar_lea.vmem %s3, %s240
        %v242 = vld [vmem:[%s207] sm:$0xff]
        %v243 = vld [vmem:[#allocation5] sm:$0xff]
        %v244 = vld [vmem:[#allocation5 + $0x8] sm:$0xff]
        %v245 = vld [vmem:[#allocation5 + $0x10] sm:$0xff]
        %v246 = vld [vmem:[#allocation5 + $0x18] sm:$0xff]
        %v247 = vld [vmem:[%s2] sm:$0x1]
        %v248 = vld [vmem:[%s241] sm:$0x1]
        %v250 = vlaneseq
        %v251 = vshrl.u32 %v250, 7
        %v252 = vsub.s32 0, %v251
        %v253 = vrot.slane %v247, %v252
        %vm255 = vcmask 261120
        %v257 = vsel %vm255, %v242, 0
        %259 = vmatprep.subr.mxu0 0.0
        %260 = vmatpush1.msra.mxu0 %v243
        %261 = vmatprep.subr.mxu0 0.0
        %262 = vmatpush1.msra.mxu0 %v244
        %263 = vmatprep.subr.mxu0 0.0
        %264 = vmatpush1.msra.mxu0 %v245
        %265 = vmatprep.subr.mxu0 0.0
        %266 = vmatpush1.msra.mxu0 %v246
        %267 = vmatprep.subr.mxu0 0.0
        %268 = vmatpush1.msra.mxu0 0.0
        %269 = vmatprep.subr.mxu0 0.0
        %270 = vmatpush1.msra.mxu0 0.0
        %271 = vmatprep.subr.mxu0 0.0
        %272 = vmatpush1.msra.mxu0 0.0
        %273 = vmatprep.subr.mxu0 0.0
        %274 = vmatpush1.msra.mxu0 0.0
        %275 = vmatprep.subr.mxu0 0.0
        %276 = vmatpush1.msra.mxu0 0.0
        %277 = vmatprep.subr.mxu0 0.0
        %278 = vmatpush1.msra.mxu0 0.0
        %279 = vmatprep.subr.mxu0 0.0
        %280 = vmatpush1.msra.mxu0 0.0
        %281 = vmatprep.subr.mxu0 0.0
        %282 = vmatpush1.msra.mxu0 0.0
        %283 = vmatprep.subr.mxu0 0.0
        %284 = vmatpush1.msra.mxu0 0.0
        %285 = vmatprep.subr.mxu0 0.0
        %286 = vmatpush1.msra.mxu0 0.0
        %287 = vmatprep.subr.mxu0 0.0
        %288 = vmatpush1.msra.mxu0 0.0
        %289 = vmatprep.subr.mxu0 0.0
        %290 = vmatpush1.msra.mxu0 0.0
        %291 = vmatprep.subr.mxu0 0.0
        %292 = vmatpush1.msra.mxu0 0.0
        %293 = vmatprep.subr.mxu0 0.0
        %294 = vmatpush1.msra.mxu0 0.0
        %295 = vmatprep.subr.mxu0 0.0
        %296 = vmatpush1.msra.mxu0 0.0
        %297 = vmatprep.subr.mxu0 0.0
        %298 = vmatpush1.msra.mxu0 0.0
        %299 = vmatprep.subr.mxu0 0.0
        %300 = vmatpush1.msra.mxu0 0.0
        %301 = vmatprep.subr.mxu0 0.0
        %302 = vmatpush1.msra.mxu0 0.0
        %303 = vmatprep.subr.mxu0 0.0
        %304 = vmatpush1.msra.mxu0 0.0
        %305 = vmatprep.subr.mxu0 0.0
        %306 = vmatpush1.msra.mxu0 0.0
        %307 = vmatprep.subr.mxu0 0.0
        %308 = vmatpush1.msra.mxu0 0.0
        %309 = vmatprep.subr.mxu0 0.0
        %310 = vmatpush1.msra.mxu0 0.0
        %311 = vmatprep.subr.mxu0 0.0
        %312 = vmatpush1.msra.mxu0 0.0
        %313 = vmatprep.subr.mxu0 0.0
        %314 = vmatpush1.msra.mxu0 0.0
        %315 = vmatprep.subr.mxu0 0.0
        %316 = vmatpush1.msra.mxu0 0.0
        %317 = vmatprep.subr.mxu0 0.0
        %318 = vmatpush1.msra.mxu0 0.0
        %319 = vmatprep.subr.mxu0 0.0
        %320 = vmatpush1.msra.mxu0 0.0
        %321 = vmatprep.subr.mxu0 0.0
        %322 = vmatpush1.msra.mxu0 0.0
        %323 = vmatprep.mubr.f32.mxu0 0.0
        %324 = vmatmul.mubr.f32.gmra.mrb[0].mxu0 %v257
        %v325 = vpop.f32.mrb[0].mxu0
        %v326 = vadd.f32 %v253, %v325
        %v327 = vpop.f32.mrb[0].mxu0
        %328 = vdwg.mxu0
        %v330 = vlaneseq
        %v331 = vshrl.u32 %v330, 7
        %v332 = vsub.s32 0, %v331
        %v333 = vrot.slane %v248, %v332
        %336 = vrot.lane.b32.xlu0 %v326, 96
        %v337 = vpop.permute.xlu0 %336
        %vm338 = vcmask 64512
        %v339 = vsel %vm338, %v326, 0
        %v341 = vsel %vm338, %v337, 0
        %343 = vmatprep.subr.mxu0 0.0
        %344 = vmatpush1.xpose.msra.mxu0 %v341
        %345 = vmatprep.subr.mxu0 0.0
        %346 = vmatpush1.xpose.msra.mxu0 0.0
        %347 = vmatprep.subr.mxu0 0.0
        %348 = vmatpush1.xpose.msra.mxu0 0.0
        %349 = vmatprep.subr.mxu0 0.0
        %350 = vmatpush1.xpose.msra.mxu0 0.0
        %351 = vmatprep.subr.mxu0 0.0
        %352 = vmatpush1.xpose.msra.mxu0 0.0
        %353 = vmatprep.subr.mxu0 0.0
        %354 = vmatpush1.xpose.msra.mxu0 0.0
        %355 = vmatprep.subr.mxu0 0.0
        %356 = vmatpush1.xpose.msra.mxu0 0.0
        %357 = vmatprep.subr.mxu0 0.0
        %358 = vmatpush1.xpose.msra.mxu0 0.0
        %359 = vmatprep.subr.mxu0 0.0
        %360 = vmatpush1.xpose.msra.mxu0 0.0
        %361 = vmatprep.subr.mxu0 0.0
        %362 = vmatpush1.xpose.msra.mxu0 0.0
        %363 = vmatprep.subr.mxu0 0.0
        %364 = vmatpush1.xpose.msra.mxu0 0.0
        %365 = vmatprep.subr.mxu0 0.0
        %366 = vmatpush1.xpose.msra.mxu0 0.0
        %367 = vmatprep.subr.mxu0 0.0
        %368 = vmatpush1.xpose.msra.mxu0 0.0
        %369 = vmatprep.subr.mxu0 0.0
        %370 = vmatpush1.xpose.msra.mxu0 0.0
        %371 = vmatprep.subr.mxu0 0.0
        %372 = vmatpush1.xpose.msra.mxu0 0.0
        %373 = vmatprep.subr.mxu0 0.0
        %374 = vmatpush1.xpose.msra.mxu0 0.0
        %375 = vmatprep.subr.mxu0 0.0
        %376 = vmatpush1.xpose.msra.mxu0 0.0
        %377 = vmatprep.subr.mxu0 0.0
        %378 = vmatpush1.xpose.msra.mxu0 0.0
        %379 = vmatprep.subr.mxu0 0.0
        %380 = vmatpush1.xpose.msra.mxu0 0.0
        %381 = vmatprep.subr.mxu0 0.0
        %382 = vmatpush1.xpose.msra.mxu0 0.0
        %383 = vmatprep.subr.mxu0 0.0
        %384 = vmatpush1.xpose.msra.mxu0 0.0
        %385 = vmatprep.subr.mxu0 0.0
        %386 = vmatpush1.xpose.msra.mxu0 0.0
        %387 = vmatprep.subr.mxu0 0.0
        %388 = vmatpush1.xpose.msra.mxu0 0.0
        %389 = vmatprep.subr.mxu0 0.0
        %390 = vmatpush1.xpose.msra.mxu0 0.0
        %391 = vmatprep.subr.mxu0 0.0
        %392 = vmatpush1.xpose.msra.mxu0 0.0
        %393 = vmatprep.subr.mxu0 0.0
        %394 = vmatpush1.xpose.msra.mxu0 0.0
        %395 = vmatprep.subr.mxu0 0.0
        %396 = vmatpush1.xpose.msra.mxu0 0.0
        %397 = vmatprep.subr.mxu0 0.0
        %398 = vmatpush1.xpose.msra.mxu0 0.0
        %399 = vmatprep.subr.mxu0 0.0
        %400 = vmatpush1.xpose.msra.mxu0 0.0
        %401 = vmatprep.subr.mxu0 0.0
        %402 = vmatpush1.xpose.msra.mxu0 0.0
        %403 = vmatprep.subr.mxu0 0.0
        %404 = vmatpush1.xpose.msra.mxu0 0.0
        %405 = vmatprep.subr.mxu0 0.0
        %406 = vmatpush1.xpose.msra.mxu0 0.0
        %407 = vmatprep.mubr.f32.mxu0 0.0
        %408 = vmatmul.mubr.f32.gmra.mrb[0].mxu0 %v339
        %v409 = vpop.f32.mrb[0].mxu0
        %v410 = vadd.f32 %v333, %v409
        %v411 = vpop.f32.mrb[0].mxu0
        %412 = vdwg.mxu0
        %v413 = vsel %vm338, %v410, -inf
        %414 = vmax.xlane.f32.xlu0 %v413
        %v415 = vpop.xlane.xlu0 %414
        %v416 = vsub.f32 %v410, %v415
        %v417 = vmul.f32 %v416, 1.442695
        %v418 = vpow.pop %v417
        %v419 = vsel %vm338, %v418, 0.0
        %420 = vadd.xlane.f32.xlu0 %v419
        %v421 = vpop.xlane.xlu0 %420
        %422 = vrot.lane.b32.xlu0 %v326, 64
        %v423 = vpop.permute.xlu0 %422
        %v426 = vsel %vm338, %v418, 0
        %428 = vmatprep.subr.mxu0 0.0
        %429 = vmatpush1.msra.mxu0 %v423
        %430 = vmatprep.subr.mxu0 0.0
        %431 = vmatpush1.msra.mxu0 0.0
        %432 = vmatprep.subr.mxu0 0.0
        %433 = vmatpush1.msra.mxu0 0.0
        %434 = vmatprep.subr.mxu0 0.0
        %435 = vmatpush1.msra.mxu0 0.0
        %436 = vmatprep.subr.mxu0 0.0
        %437 = vmatpush1.msra.mxu0 0.0
        %438 = vmatprep.subr.mxu0 0.0
        %439 = vmatpush1.msra.mxu0 0.0
        %440 = vmatprep.subr.mxu0 0.0
        %441 = vmatpush1.msra.mxu0 0.0
        %442 = vmatprep.subr.mxu0 0.0
        %443 = vmatpush1.msra.mxu0 0.0
        %444 = vmatprep.subr.mxu0 0.0
        %445 = vmatpush1.msra.mxu0 0.0
        %446 = vmatprep.subr.mxu0 0.0
        %447 = vmatpush1.msra.mxu0 0.0
        %448 = vmatprep.subr.mxu0 0.0
        %449 = vmatpush1.msra.mxu0 0.0
        %450 = vmatprep.subr.mxu0 0.0
        %451 = vmatpush1.msra.mxu0 0.0
        %452 = vmatprep.subr.mxu0 0.0
        %453 = vmatpush1.msra.mxu0 0.0
        %454 = vmatprep.subr.mxu0 0.0
        %455 = vmatpush1.msra.mxu0 0.0
        %456 = vmatprep.subr.mxu0 0.0
        %457 = vmatpush1.msra.mxu0 0.0
        %458 = vmatprep.subr.mxu0 0.0
        %459 = vmatpush1.msra.mxu0 0.0
        %460 = vmatprep.subr.mxu0 0.0
        %461 = vmatpush1.msra.mxu0 0.0
        %462 = vmatprep.subr.mxu0 0.0
        %463 = vmatpush1.msra.mxu0 0.0
        %464 = vmatprep.subr.mxu0 0.0
        %465 = vmatpush1.msra.mxu0 0.0
        %466 = vmatprep.subr.mxu0 0.0
        %467 = vmatpush1.msra.mxu0 0.0
        %468 = vmatprep.subr.mxu0 0.0
        %469 = vmatpush1.msra.mxu0 0.0
        %470 = vmatprep.subr.mxu0 0.0
        %471 = vmatpush1.msra.mxu0 0.0
        %472 = vmatprep.subr.mxu0 0.0
        %473 = vmatpush1.msra.mxu0 0.0
        %474 = vmatprep.subr.mxu0 0.0
        %475 = vmatpush1.msra.mxu0 0.0
        %476 = vmatprep.subr.mxu0 0.0
        %477 = vmatpush1.msra.mxu0 0.0
        %478 = vmatprep.subr.mxu0 0.0
        %479 = vmatpush1.msra.mxu0 0.0
        %480 = vmatprep.subr.mxu0 0.0
        %481 = vmatpush1.msra.mxu0 0.0
        %482 = vmatprep.subr.mxu0 0.0
        %483 = vmatpush1.msra.mxu0 0.0
        %484 = vmatprep.subr.mxu0 0.0
        %485 = vmatpush1.msra.mxu0 0.0
        %486 = vmatprep.subr.mxu0 0.0
        %487 = vmatpush1.msra.mxu0 0.0
        %488 = vmatprep.subr.mxu0 0.0
        %489 = vmatpush1.msra.mxu0 0.0
        %490 = vmatprep.subr.mxu0 0.0
        %491 = vmatpush1.msra.mxu0 0.0
        %492 = vmatprep.mubr.f32.mxu0 0.0
        %493 = vmatmul.mubr.f32.gmra.mrb[0].mxu0 %v426
        %v494 = vpop.f32.mrb[0].mxu0
        %v495 = vadd.f32 0.0, %v494
        %v496 = vpop.f32.mrb[0].mxu0
        %497 = vdwg.mxu0
        %v498 = vrcp.pop %v421
        %v499 = vmul.f32 %v495, %v498
        %500 = vst.msk [vmem:[%s238] sm:$0xff] %vm338, %v499
        %501 = vrot.lane.b32.xlu0 %v326, 120
        %v502 = vpop.permute.xlu0 %501
        %503 = vrot.lane.b32.xlu0 %v326, 88
        %v504 = vpop.permute.xlu0 %503
        %v505 = vsel %vm338, %v502, 0
        %v507 = vsel %vm338, %v504, 0
        %509 = vmatprep.subr.mxu0 0.0
        %510 = vmatpush1.xpose.msra.mxu0 %v507
        %511 = vmatprep.subr.mxu0 0.0
        %512 = vmatpush1.xpose.msra.mxu0 0.0
        %513 = vmatprep.subr.mxu0 0.0
        %514 = vmatpush1.xpose.msra.mxu0 0.0
        %515 = vmatprep.subr.mxu0 0.0
        %516 = vmatpush1.xpose.msra.mxu0 0.0
        %517 = vmatprep.subr.mxu0 0.0
        %518 = vmatpush1.xpose.msra.mxu0 0.0
        %519 = vmatprep.subr.mxu0 0.0
        %520 = vmatpush1.xpose.msra.mxu0 0.0
        %521 = vmatprep.subr.mxu0 0.0
        %522 = vmatpush1.xpose.msra.mxu0 0.0
        %523 = vmatprep.subr.mxu0 0.0
        %524 = vmatpush1.xpose.msra.mxu0 0.0
        %525 = vmatprep.subr.mxu0 0.0
        %526 = vmatpush1.xpose.msra.mxu0 0.0
        %527 = vmatprep.subr.mxu0 0.0
        %528 = vmatpush1.xpose.msra.mxu0 0.0
        %529 = vmatprep.subr.mxu0 0.0
        %530 = vmatpush1.xpose.msra.mxu0 0.0
        %531 = vmatprep.subr.mxu0 0.0
        %532 = vmatpush1.xpose.msra.mxu0 0.0
        %533 = vmatprep.subr.mxu0 0.0
        %534 = vmatpush1.xpose.msra.mxu0 0.0
        %535 = vmatprep.subr.mxu0 0.0
        %536 = vmatpush1.xpose.msra.mxu0 0.0
        %537 = vmatprep.subr.mxu0 0.0
        %538 = vmatpush1.xpose.msra.mxu0 0.0
        %539 = vmatprep.subr.mxu0 0.0
        %540 = vmatpush1.xpose.msra.mxu0 0.0
        %541 = vmatprep.subr.mxu0 0.0
        %542 = vmatpush1.xpose.msra.mxu0 0.0
        %543 = vmatprep.subr.mxu0 0.0
        %544 = vmatpush1.xpose.msra.mxu0 0.0
        %545 = vmatprep.subr.mxu0 0.0
        %546 = vmatpush1.xpose.msra.mxu0 0.0
        %547 = vmatprep.subr.mxu0 0.0
        %548 = vmatpush1.xpose.msra.mxu0 0.0
        %549 = vmatprep.subr.mxu0 0.0
        %550 = vmatpush1.xpose.msra.mxu0 0.0
        %551 = vmatprep.subr.mxu0 0.0
        %552 = vmatpush1.xpose.msra.mxu0 0.0
        %553 = vmatprep.subr.mxu0 0.0
        %554 = vmatpush1.xpose.msra.mxu0 0.0
        %555 = vmatprep.subr.mxu0 0.0
        %556 = vmatpush1.xpose.msra.mxu0 0.0
        %557 = vmatprep.subr.mxu0 0.0
        %558 = vmatpush1.xpose.msra.mxu0 0.0
        %559 = vmatprep.subr.mxu0 0.0
        %560 = vmatpush1.xpose.msra.mxu0 0.0
        %561 = vmatprep.subr.mxu0 0.0
        %562 = vmatpush1.xpose.msra.mxu0 0.0
        %563 = vmatprep.subr.mxu0 0.0
        %564 = vmatpush1.xpose.msra.mxu0 0.0
        %565 = vmatprep.subr.mxu0 0.0
        %566 = vmatpush1.xpose.msra.mxu0 0.0
        %567 = vmatprep.subr.mxu0 0.0
        %568 = vmatpush1.xpose.msra.mxu0 0.0
        %569 = vmatprep.subr.mxu0 0.0
        %570 = vmatpush1.xpose.msra.mxu0 0.0
        %571 = vmatprep.subr.mxu0 0.0
        %572 = vmatpush1.xpose.msra.mxu0 0.0
        %573 = vmatprep.mubr.f32.mxu0 0.0
        %574 = vmatmul.mubr.f32.gmra.mrb[0].mxu0 %v505
        %v575 = vpop.f32.mrb[0].mxu0
        %v576 = vadd.f32 %v333, %v575
        %v577 = vpop.f32.mrb[0].mxu0
        %578 = vdwg.mxu0
        %v579 = vsel %vm338, %v576, -inf
        %580 = vmax.xlane.f32.xlu0 %v579
        %v581 = vpop.xlane.xlu0 %580
        %v582 = vsub.f32 %v576, %v581
        %v583 = vmul.f32 %v582, 1.442695
        %v584 = vpow.pop %v583
        %v585 = vsel %vm338, %v584, 0.0
        %586 = vadd.xlane.f32.xlu0 %v585
        %v587 = vpop.xlane.xlu0 %586
        %588 = vrot.lane.b32.xlu0 %v326, 56
        %v589 = vpop.permute.xlu0 %588
        %v592 = vsel %vm338, %v584, 0
        %594 = vmatprep.subr.mxu0 0.0
        %595 = vmatpush1.msra.mxu0 %v589
        %596 = vmatprep.subr.mxu0 0.0
        %597 = vmatpush1.msra.mxu0 0.0
        %598 = vmatprep.subr.mxu0 0.0
        %599 = vmatpush1.msra.mxu0 0.0
        %600 = vmatprep.subr.mxu0 0.0
        %601 = vmatpush1.msra.mxu0 0.0
        %602 = vmatprep.subr.mxu0 0.0
        %603 = vmatpush1.msra.mxu0 0.0
        %604 = vmatprep.subr.mxu0 0.0
        %605 = vmatpush1.msra.mxu0 0.0
        %606 = vmatprep.subr.mxu0 0.0
        %607 = vmatpush1.msra.mxu0 0.0
        %608 = vmatprep.subr.mxu0 0.0
        %609 = vmatpush1.msra.mxu0 0.0
        %610 = vmatprep.subr.mxu0 0.0
        %611 = vmatpush1.msra.mxu0 0.0
        %612 = vmatprep.subr.mxu0 0.0
        %613 = vmatpush1.msra.mxu0 0.0
        %614 = vmatprep.subr.mxu0 0.0
        %615 = vmatpush1.msra.mxu0 0.0
        %616 = vmatprep.subr.mxu0 0.0
        %617 = vmatpush1.msra.mxu0 0.0
        %618 = vmatprep.subr.mxu0 0.0
        %619 = vmatpush1.msra.mxu0 0.0
        %620 = vmatprep.subr.mxu0 0.0
        %621 = vmatpush1.msra.mxu0 0.0
        %622 = vmatprep.subr.mxu0 0.0
        %623 = vmatpush1.msra.mxu0 0.0
        %624 = vmatprep.subr.mxu0 0.0
        %625 = vmatpush1.msra.mxu0 0.0
        %626 = vmatprep.subr.mxu0 0.0
        %627 = vmatpush1.msra.mxu0 0.0
        %628 = vmatprep.subr.mxu0 0.0
        %629 = vmatpush1.msra.mxu0 0.0
        %630 = vmatprep.subr.mxu0 0.0
        %631 = vmatpush1.msra.mxu0 0.0
        %632 = vmatprep.subr.mxu0 0.0
        %633 = vmatpush1.msra.mxu0 0.0
        %634 = vmatprep.subr.mxu0 0.0
        %635 = vmatpush1.msra.mxu0 0.0
        %636 = vmatprep.subr.mxu0 0.0
        %637 = vmatpush1.msra.mxu0 0.0
        %638 = vmatprep.subr.mxu0 0.0
        %639 = vmatpush1.msra.mxu0 0.0
        %640 = vmatprep.subr.mxu0 0.0
        %641 = vmatpush1.msra.mxu0 0.0
        %642 = vmatprep.subr.mxu0 0.0
        %643 = vmatpush1.msra.mxu0 0.0
        %644 = vmatprep.subr.mxu0 0.0
        %645 = vmatpush1.msra.mxu0 0.0
        %646 = vmatprep.subr.mxu0 0.0
        %647 = vmatpush1.msra.mxu0 0.0
        %648 = vmatprep.subr.mxu0 0.0
        %649 = vmatpush1.msra.mxu0 0.0
        %650 = vmatprep.subr.mxu0 0.0
        %651 = vmatpush1.msra.mxu0 0.0
        %652 = vmatprep.subr.mxu0 0.0
        %653 = vmatpush1.msra.mxu0 0.0
        %654 = vmatprep.subr.mxu0 0.0
        %655 = vmatpush1.msra.mxu0 0.0
        %656 = vmatprep.subr.mxu0 0.0
        %657 = vmatpush1.msra.mxu0 0.0
        %658 = vmatprep.mubr.f32.mxu0 0.0
        %659 = vmatmul.mubr.f32.gmra.mrb[0].mxu0 %v592
        %v660 = vpop.f32.mrb[0].mxu0
        %v661 = vadd.f32 0.0, %v660
        %v662 = vpop.f32.mrb[0].mxu0
        %663 = vdwg.mxu0
        %v664 = vrcp.pop %v587
        %v665 = vmul.f32 %v661, %v664
        %667 = vrot.lane.b32.xlu0 %v665, 8
        %v668 = vpop.permute.xlu0 %667
        %vm670 = vcmask 130112
        %671 = vst.msk [vmem:[%s238] sm:$0xff] %vm670, %v668
        %672 = vrot.lane.b32.xlu0 %v326, 112
        %v673 = vpop.permute.xlu0 %672
        %674 = vrot.lane.b32.xlu0 %v326, 80
        %v675 = vpop.permute.xlu0 %674
        %v676 = vsel %vm338, %v673, 0
        %v678 = vsel %vm338, %v675, 0
        %680 = vmatprep.subr.mxu0 0.0
        %681 = vmatpush1.xpose.msra.mxu0 %v678
        %682 = vmatprep.subr.mxu0 0.0
        %683 = vmatpush1.xpose.msra.mxu0 0.0
        %684 = vmatprep.subr.mxu0 0.0
        %685 = vmatpush1.xpose.msra.mxu0 0.0
        %686 = vmatprep.subr.mxu0 0.0
        %687 = vmatpush1.xpose.msra.mxu0 0.0
        %688 = vmatprep.subr.mxu0 0.0
        %689 = vmatpush1.xpose.msra.mxu0 0.0
        %690 = vmatprep.subr.mxu0 0.0
        %691 = vmatpush1.xpose.msra.mxu0 0.0
        %692 = vmatprep.subr.mxu0 0.0
        %693 = vmatpush1.xpose.msra.mxu0 0.0
        %694 = vmatprep.subr.mxu0 0.0
        %695 = vmatpush1.xpose.msra.mxu0 0.0
        %696 = vmatprep.subr.mxu0 0.0
        %697 = vmatpush1.xpose.msra.mxu0 0.0
        %698 = vmatprep.subr.mxu0 0.0
        %699 = vmatpush1.xpose.msra.mxu0 0.0
        %700 = vmatprep.subr.mxu0 0.0
        %701 = vmatpush1.xpose.msra.mxu0 0.0
        %702 = vmatprep.subr.mxu0 0.0
        %703 = vmatpush1.xpose.msra.mxu0 0.0
        %704 = vmatprep.subr.mxu0 0.0
        %705 = vmatpush1.xpose.msra.mxu0 0.0
        %706 = vmatprep.subr.mxu0 0.0
        %707 = vmatpush1.xpose.msra.mxu0 0.0
        %708 = vmatprep.subr.mxu0 0.0
        %709 = vmatpush1.xpose.msra.mxu0 0.0
        %710 = vmatprep.subr.mxu0 0.0
        %711 = vmatpush1.xpose.msra.mxu0 0.0
        %712 = vmatprep.subr.mxu0 0.0
        %713 = vmatpush1.xpose.msra.mxu0 0.0
        %714 = vmatprep.subr.mxu0 0.0
        %715 = vmatpush1.xpose.msra.mxu0 0.0
        %716 = vmatprep.subr.mxu0 0.0
        %717 = vmatpush1.xpose.msra.mxu0 0.0
        %718 = vmatprep.subr.mxu0 0.0
        %719 = vmatpush1.xpose.msra.mxu0 0.0
        %720 = vmatprep.subr.mxu0 0.0
        %721 = vmatpush1.xpose.msra.mxu0 0.0
        %722 = vmatprep.subr.mxu0 0.0
        %723 = vmatpush1.xpose.msra.mxu0 0.0
        %724 = vmatprep.subr.mxu0 0.0
        %725 = vmatpush1.xpose.msra.mxu0 0.0
        %726 = vmatprep.subr.mxu0 0.0
        %727 = vmatpush1.xpose.msra.mxu0 0.0
        %728 = vmatprep.subr.mxu0 0.0
        %729 = vmatpush1.xpose.msra.mxu0 0.0
        %730 = vmatprep.subr.mxu0 0.0
        %731 = vmatpush1.xpose.msra.mxu0 0.0
        %732 = vmatprep.subr.mxu0 0.0
        %733 = vmatpush1.xpose.msra.mxu0 0.0
        %734 = vmatprep.subr.mxu0 0.0
        %735 = vmatpush1.xpose.msra.mxu0 0.0
        %736 = vmatprep.subr.mxu0 0.0
        %737 = vmatpush1.xpose.msra.mxu0 0.0
        %738 = vmatprep.subr.mxu0 0.0
        %739 = vmatpush1.xpose.msra.mxu0 0.0
        %740 = vmatprep.subr.mxu0 0.0
        %741 = vmatpush1.xpose.msra.mxu0 0.0
        %742 = vmatprep.subr.mxu0 0.0
        %743 = vmatpush1.xpose.msra.mxu0 0.0
        %744 = vmatprep.mubr.f32.mxu0 0.0
        %745 = vmatmul.mubr.f32.gmra.mrb[0].mxu0 %v676
        %v746 = vpop.f32.mrb[0].mxu0
        %v747 = vadd.f32 %v333, %v746
        %v748 = vpop.f32.mrb[0].mxu0
        %749 = vdwg.mxu0
        %v750 = vsel %vm338, %v747, -inf
        %751 = vmax.xlane.f32.xlu0 %v750
        %v752 = vpop.xlane.xlu0 %751
        %v753 = vsub.f32 %v747, %v752
        %v754 = vmul.f32 %v753, 1.442695
        %v755 = vpow.pop %v754
        %v756 = vsel %vm338, %v755, 0.0
        %757 = vadd.xlane.f32.xlu0 %v756
        %v758 = vpop.xlane.xlu0 %757
        %759 = vrot.lane.b32.xlu0 %v326, 48
        %v760 = vpop.permute.xlu0 %759
        %v763 = vsel %vm338, %v755, 0
        %765 = vmatprep.subr.mxu0 0.0
        %766 = vmatpush1.msra.mxu0 %v760
        %767 = vmatprep.subr.mxu0 0.0
        %768 = vmatpush1.msra.mxu0 0.0
        %769 = vmatprep.subr.mxu0 0.0
        %770 = vmatpush1.msra.mxu0 0.0
        %771 = vmatprep.subr.mxu0 0.0
        %772 = vmatpush1.msra.mxu0 0.0
        %773 = vmatprep.subr.mxu0 0.0
        %774 = vmatpush1.msra.mxu0 0.0
        %775 = vmatprep.subr.mxu0 0.0
        %776 = vmatpush1.msra.mxu0 0.0
        %777 = vmatprep.subr.mxu0 0.0
        %778 = vmatpush1.msra.mxu0 0.0
        %779 = vmatprep.subr.mxu0 0.0
        %780 = vmatpush1.msra.mxu0 0.0
        %781 = vmatprep.subr.mxu0 0.0
        %782 = vmatpush1.msra.mxu0 0.0
        %783 = vmatprep.subr.mxu0 0.0
        %784 = vmatpush1.msra.mxu0 0.0
        %785 = vmatprep.subr.mxu0 0.0
        %786 = vmatpush1.msra.mxu0 0.0
        %787 = vmatprep.subr.mxu0 0.0
        %788 = vmatpush1.msra.mxu0 0.0
        %789 = vmatprep.subr.mxu0 0.0
        %790 = vmatpush1.msra.mxu0 0.0
        %791 = vmatprep.subr.mxu0 0.0
        %792 = vmatpush1.msra.mxu0 0.0
        %793 = vmatprep.subr.mxu0 0.0
        %794 = vmatpush1.msra.mxu0 0.0
        %795 = vmatprep.subr.mxu0 0.0
        %796 = vmatpush1.msra.mxu0 0.0
        %797 = vmatprep.subr.mxu0 0.0
        %798 = vmatpush1.msra.mxu0 0.0
        %799 = vmatprep.subr.mxu0 0.0
        %800 = vmatpush1.msra.mxu0 0.0
        %801 = vmatprep.subr.mxu0 0.0
        %802 = vmatpush1.msra.mxu0 0.0
        %803 = vmatprep.subr.mxu0 0.0
        %804 = vmatpush1.msra.mxu0 0.0
        %805 = vmatprep.subr.mxu0 0.0
        %806 = vmatpush1.msra.mxu0 0.0
        %807 = vmatprep.subr.mxu0 0.0
        %808 = vmatpush1.msra.mxu0 0.0
        %809 = vmatprep.subr.mxu0 0.0
        %810 = vmatpush1.msra.mxu0 0.0
        %811 = vmatprep.subr.mxu0 0.0
        %812 = vmatpush1.msra.mxu0 0.0
        %813 = vmatprep.subr.mxu0 0.0
        %814 = vmatpush1.msra.mxu0 0.0
        %815 = vmatprep.subr.mxu0 0.0
        %816 = vmatpush1.msra.mxu0 0.0
        %817 = vmatprep.subr.mxu0 0.0
        %818 = vmatpush1.msra.mxu0 0.0
        %819 = vmatprep.subr.mxu0 0.0
        %820 = vmatpush1.msra.mxu0 0.0
        %821 = vmatprep.subr.mxu0 0.0
        %822 = vmatpush1.msra.mxu0 0.0
        %823 = vmatprep.subr.mxu0 0.0
        %824 = vmatpush1.msra.mxu0 0.0
        %825 = vmatprep.subr.mxu0 0.0
        %826 = vmatpush1.msra.mxu0 0.0
        %827 = vmatprep.subr.mxu0 0.0
        %828 = vmatpush1.msra.mxu0 0.0
        %829 = vmatprep.mubr.f32.mxu0 0.0
        %830 = vmatmul.mubr.f32.gmra.mrb[0].mxu0 %v763
        %v831 = vpop.f32.mrb[0].mxu0
        %v832 = vadd.f32 0.0, %v831
        %v833 = vpop.f32.mrb[0].mxu0
        %834 = vdwg.mxu0
        %v835 = vrcp.pop %v758
        %v836 = vmul.f32 %v832, %v835
        %838 = vrot.lane.b32.xlu0 %v836, 16
        %v839 = vpop.permute.xlu0 %838
        %vm841 = vcmask 195712
        %842 = vst.msk [vmem:[%s238] sm:$0xff] %vm841, %v839
        %843 = vrot.lane.b32.xlu0 %v326, 104
        %v844 = vpop.permute.xlu0 %843
        %845 = vrot.lane.b32.xlu0 %v326, 72
        %v846 = vpop.permute.xlu0 %845
        %v847 = vsel %vm338, %v844, 0
        %v849 = vsel %vm338, %v846, 0
        %851 = vmatprep.subr.mxu0 0.0
        %852 = vmatpush1.xpose.msra.mxu0 %v849
        %853 = vmatprep.subr.mxu0 0.0
        %854 = vmatpush1.xpose.msra.mxu0 0.0
        %855 = vmatprep.subr.mxu0 0.0
        %856 = vmatpush1.xpose.msra.mxu0 0.0
        %857 = vmatprep.subr.mxu0 0.0
        %858 = vmatpush1.xpose.msra.mxu0 0.0
        %859 = vmatprep.subr.mxu0 0.0
        %860 = vmatpush1.xpose.msra.mxu0 0.0
        %861 = vmatprep.subr.mxu0 0.0
        %862 = vmatpush1.xpose.msra.mxu0 0.0
        %863 = vmatprep.subr.mxu0 0.0
        %864 = vmatpush1.xpose.msra.mxu0 0.0
        %865 = vmatprep.subr.mxu0 0.0
        %866 = vmatpush1.xpose.msra.mxu0 0.0
        %867 = vmatprep.subr.mxu0 0.0
        %868 = vmatpush1.xpose.msra.mxu0 0.0
        %869 = vmatprep.subr.mxu0 0.0
        %870 = vmatpush1.xpose.msra.mxu0 0.0
        %871 = vmatprep.subr.mxu0 0.0
        %872 = vmatpush1.xpose.msra.mxu0 0.0
        %873 = vmatprep.subr.mxu0 0.0
        %874 = vmatpush1.xpose.msra.mxu0 0.0
        %875 = vmatprep.subr.mxu0 0.0
        %876 = vmatpush1.xpose.msra.mxu0 0.0
        %877 = vmatprep.subr.mxu0 0.0
        %878 = vmatpush1.xpose.msra.mxu0 0.0
        %879 = vmatprep.subr.mxu0 0.0
        %880 = vmatpush1.xpose.msra.mxu0 0.0
        %881 = vmatprep.subr.mxu0 0.0
        %882 = vmatpush1.xpose.msra.mxu0 0.0
        %883 = vmatprep.subr.mxu0 0.0
        %884 = vmatpush1.xpose.msra.mxu0 0.0
        %885 = vmatprep.subr.mxu0 0.0
        %886 = vmatpush1.xpose.msra.mxu0 0.0
        %887 = vmatprep.subr.mxu0 0.0
        %888 = vmatpush1.xpose.msra.mxu0 0.0
        %889 = vmatprep.subr.mxu0 0.0
        %890 = vmatpush1.xpose.msra.mxu0 0.0
        %891 = vmatprep.subr.mxu0 0.0
        %892 = vmatpush1.xpose.msra.mxu0 0.0
        %893 = vmatprep.subr.mxu0 0.0
        %894 = vmatpush1.xpose.msra.mxu0 0.0
        %895 = vmatprep.subr.mxu0 0.0
        %896 = vmatpush1.xpose.msra.mxu0 0.0
        %897 = vmatprep.subr.mxu0 0.0
        %898 = vmatpush1.xpose.msra.mxu0 0.0
        %899 = vmatprep.subr.mxu0 0.0
        %900 = vmatpush1.xpose.msra.mxu0 0.0
        %901 = vmatprep.subr.mxu0 0.0
        %902 = vmatpush1.xpose.msra.mxu0 0.0
        %903 = vmatprep.subr.mxu0 0.0
        %904 = vmatpush1.xpose.msra.mxu0 0.0
        %905 = vmatprep.subr.mxu0 0.0
        %906 = vmatpush1.xpose.msra.mxu0 0.0
        %907 = vmatprep.subr.mxu0 0.0
        %908 = vmatpush1.xpose.msra.mxu0 0.0
        %909 = vmatprep.subr.mxu0 0.0
        %910 = vmatpush1.xpose.msra.mxu0 0.0
        %911 = vmatprep.subr.mxu0 0.0
        %912 = vmatpush1.xpose.msra.mxu0 0.0
        %913 = vmatprep.subr.mxu0 0.0
        %914 = vmatpush1.xpose.msra.mxu0 0.0
        %915 = vmatprep.mubr.f32.mxu0 0.0
        %916 = vmatmul.mubr.f32.gmra.mrb[0].mxu0 %v847
        %v917 = vpop.f32.mrb[0].mxu0
        %v918 = vadd.f32 %v333, %v917
        %v919 = vpop.f32.mrb[0].mxu0
        %920 = vdwg.mxu0
        %v921 = vsel %vm338, %v918, -inf
        %922 = vmax.xlane.f32.xlu0 %v921
        %v923 = vpop.xlane.xlu0 %922
        %v924 = vsub.f32 %v918, %v923
        %v925 = vmul.f32 %v924, 1.442695
        %v926 = vpow.pop %v925
        %v927 = vsel %vm338, %v926, 0.0
        %928 = vadd.xlane.f32.xlu0 %v927
        %v929 = vpop.xlane.xlu0 %928
        %930 = vrot.lane.b32.xlu0 %v326, 40
        %v931 = vpop.permute.xlu0 %930
        %v934 = vsel %vm338, %v926, 0
        %936 = vmatprep.subr.mxu0 0.0
        %937 = vmatpush1.msra.mxu0 %v931
        %938 = vmatprep.subr.mxu0 0.0
        %939 = vmatpush1.msra.mxu0 0.0
        %940 = vmatprep.subr.mxu0 0.0
        %941 = vmatpush1.msra.mxu0 0.0
        %942 = vmatprep.subr.mxu0 0.0
        %943 = vmatpush1.msra.mxu0 0.0
        %944 = vmatprep.subr.mxu0 0.0
        %945 = vmatpush1.msra.mxu0 0.0
        %946 = vmatprep.subr.mxu0 0.0
        %947 = vmatpush1.msra.mxu0 0.0
        %948 = vmatprep.subr.mxu0 0.0
        %949 = vmatpush1.msra.mxu0 0.0
        %950 = vmatprep.subr.mxu0 0.0
        %951 = vmatpush1.msra.mxu0 0.0
        %952 = vmatprep.subr.mxu0 0.0
        %953 = vmatpush1.msra.mxu0 0.0
        %954 = vmatprep.subr.mxu0 0.0
        %955 = vmatpush1.msra.mxu0 0.0
        %956 = vmatprep.subr.mxu0 0.0
        %957 = vmatpush1.msra.mxu0 0.0
        %958 = vmatprep.subr.mxu0 0.0
        %959 = vmatpush1.msra.mxu0 0.0
        %960 = vmatprep.subr.mxu0 0.0
        %961 = vmatpush1.msra.mxu0 0.0
        %962 = vmatprep.subr.mxu0 0.0
        %963 = vmatpush1.msra.mxu0 0.0
        %964 = vmatprep.subr.mxu0 0.0
        %965 = vmatpush1.msra.mxu0 0.0
        %966 = vmatprep.subr.mxu0 0.0
        %967 = vmatpush1.msra.mxu0 0.0
        %968 = vmatprep.subr.mxu0 0.0
        %969 = vmatpush1.msra.mxu0 0.0
        %970 = vmatprep.subr.mxu0 0.0
        %971 = vmatpush1.msra.mxu0 0.0
        %972 = vmatprep.subr.mxu0 0.0
        %973 = vmatpush1.msra.mxu0 0.0
        %974 = vmatprep.subr.mxu0 0.0
        %975 = vmatpush1.msra.mxu0 0.0
        %976 = vmatprep.subr.mxu0 0.0
        %977 = vmatpush1.msra.mxu0 0.0
        %978 = vmatprep.subr.mxu0 0.0
        %979 = vmatpush1.msra.mxu0 0.0
        %980 = vmatprep.subr.mxu0 0.0
        %981 = vmatpush1.msra.mxu0 0.0
        %982 = vmatprep.subr.mxu0 0.0
        %983 = vmatpush1.msra.mxu0 0.0
        %984 = vmatprep.subr.mxu0 0.0
        %985 = vmatpush1.msra.mxu0 0.0
        %986 = vmatprep.subr.mxu0 0.0
        %987 = vmatpush1.msra.mxu0 0.0
        %988 = vmatprep.subr.mxu0 0.0
        %989 = vmatpush1.msra.mxu0 0.0
        %990 = vmatprep.subr.mxu0 0.0
        %991 = vmatpush1.msra.mxu0 0.0
        %992 = vmatprep.subr.mxu0 0.0
        %993 = vmatpush1.msra.mxu0 0.0
        %994 = vmatprep.subr.mxu0 0.0
        %995 = vmatpush1.msra.mxu0 0.0
        %996 = vmatprep.subr.mxu0 0.0
        %997 = vmatpush1.msra.mxu0 0.0
        %998 = vmatprep.subr.mxu0 0.0
        %999 = vmatpush1.msra.mxu0 0.0
        %1000 = vmatprep.mubr.f32.mxu0 0.0
        %1001 = vmatmul.mubr.f32.gmra.mrb[0].mxu0 %v934
        %v1002 = vpop.f32.mrb[0].mxu0
        %v1003 = vadd.f32 0.0, %v1002
        %v1004 = vpop.f32.mrb[0].mxu0
        %1005 = vdwg.mxu0
        %v1006 = vrcp.pop %v929
        %v1007 = vmul.f32 %v1003, %v1006
        %1009 = vrot.lane.b32.xlu0 %v1007, 24
        %v1010 = vpop.permute.xlu0 %1009
        %vm1012 = vcmask 261312
        %1013 = vst.msk [vmem:[%s238] sm:$0xff] %vm1012, %v1010
        %s1014 = sand.u32 %s124, 1
        %s1015 = scalar_lea.sflag [#allocation4], %s1014
        %s1016 = sand.u32 %s124, 1
        %s1017 = smul.addr %s1016, 8
        %s1018 = scalar_lea.vmem [#allocation7], %s1017
        // Predicated region
        $region45: #{tpu_custom_call.1} parent=35 // pred_check
          %p1019 = pneg %p134
        $region46: #{tpu_custom_call.1} parent=35 // pred_check_branch
          %1021 = sbr.rel (%p1019) target = $region48
        $region47: #{tpu_custom_call.1} parent=35 // pred_region
          %s1023 = ssub.s32 128, 128
          %1024 = vsyncadd %s1015, %s1023
          %s1025 = smul.addr %s22, 128
          %s1026 = scalar_lea.hbm %s4, %s1025
          %s1028 = sshll.u32 %s1018, 4
          %s1029 = int_to_ptr.vmem [resolvable:$true] %s1028
          %1031 = dma.vmem_to_hbm [thread:$0]  %s1029, 128, %s1026, %s1015
        $region48: #{tpu_custom_call.1} parent=35 // pred_fallthru
          _
      $region36: #{tpu_custom_call.1} parent=5 // pred_fallthru
        _
      %p1032 = scmp.le.s32.totalorder 2, %s17
      // Predicated region
      $region49: #{tpu_custom_call.1} parent=5 // pred_check
        %p1033 = pneg %p1032
      $region50: #{tpu_custom_call.1} parent=5 // pred_check_branch
        %1035 = sbr.rel (%p1033) target = $region52
      $region51: #{tpu_custom_call.1} parent=5 // pred_region
        %s1036 = ssub.s32 %s17, 2
        // Predicated region
        $region53: #{tpu_custom_call.1} parent=51 // pred_check
          %p1037 = pneg %p140
        $region54: #{tpu_custom_call.1} parent=51 // pred_check_branch
          %1039 = sbr.rel (%p1037) target = $region56
        $region55: #{tpu_custom_call.1} parent=51 // pred_region
          %s1040 = sand.u32 %s125, 1
          %s1041 = scalar_lea.sflag [#allocation4], %s1040
          %s1042 = sand.u32 %s125, 1
          %s1043 = smul.addr %s1042, 8
          %s1044 = scalar_lea.vmem [#allocation7], %s1043
          %1045 = dma.done %s1041, 128
        $region56: #{tpu_custom_call.1} parent=51 // pred_fallthru
          _
      $region52: #{tpu_custom_call.1} parent=5 // pred_fallthru
        _
    $region6: #{tpu_custom_call.1} parent=1 // loop_footer
      %s21 = sadd.s32 1, %s17
    $region7: #{tpu_custom_call.1} parent=1 // loop_footer_branch
      %16 = sbr.rel target = $region3
    $region8: #{tpu_custom_call.1} parent=1 // loop_exit
      _
    %1046 = vsyncpa [#allocation3], 1
    %s1047 = scalar_lea.sflag [#allocation3], 1
    %1048 = vsyncpa %s1047, 1
    %1049 = vsyncpa [#allocation6], 1
    %1050 = vsyncpa [#allocation4], 1
    %s1051 = scalar_lea.sflag [#allocation4], 1
    %1052 = vsyncpa %s1051, 1

</llo_original>
